<compile_context>
chip_gen: v7x
topology: tpu7x:2x2x1
jax: 0.10.0
libtpu: 0.0.40
codegen_flags: <defaults>
</compile_context>

<pallas_src>
import jax
import jax.numpy as jnp
from jax import lax
from jax.experimental import pallas as pl
from jax.experimental.pallas import tpu as pltpu

TEMPERATURE = 0.7
NORM_EPS = 1e-12          # F.normalize eps (clamp on the norm)
CLAMP_EPS = 1e-8


def _make_kernel(temperature):
    inv_t = 1.0 / float(temperature)
    eps2 = NORM_EPS * NORM_EPS      # clamp on squared norm == clamp on norm

    def kernel(q_ref, a1_ref, a2_ref, tgt_ref, loss_ref, eq_ref):
        q = q_ref[...].astype(jnp.float32)        # (tb, D)
        a1 = a1_ref[...].astype(jnp.float32)
        a2 = a2_ref[...].astype(jnp.float32)

        # Row-wise squared norms / cross dots; no normalized (tb, D) temps.
        sq = jnp.maximum(jnp.sum(q * q, axis=-1, keepdims=True), eps2)
        s1 = jnp.maximum(jnp.sum(a1 * a1, axis=-1, keepdims=True), eps2)
        s2 = jnp.maximum(jnp.sum(a2 * a2, axis=-1, keepdims=True), eps2)
        dqa = jnp.sum(q * a1, axis=-1, keepdims=True)
        dqc = jnp.sum(q * a2, axis=-1, keepdims=True)

        # Fused: 1/(max(|q|,eps)*max(|a|,eps)) == rsqrt(max(sq,e2)*max(sa,e2))
        qa = dqa * lax.rsqrt(sq * s1) * inv_t     # (tb, 1)
        qc = dqc * lax.rsqrt(sq * s2) * inv_t     # (tb, 1)

        t0 = tgt_ref[:, 0:1]                      # (tb, 1)
        t1 = tgt_ref[:, 1:2]

        exp_qa = jnp.exp(qa)
        exp_qc = jnp.exp(qc)
        up = jnp.maximum((1.0 - t0) * exp_qa + (1.0 - t1) * exp_qc, CLAMP_EPS)
        down = jnp.maximum(t0 * exp_qa + t1 * exp_qc, CLAMP_EPS)
        loss_ref[...] = jnp.log(up) - jnp.log(down)

        # (qa > qc) == target[0]   (targets are 0/1 valued)
        correct = (qa > qc).astype(jnp.float32)
        eq_ref[...] = (correct == t0).astype(jnp.int32)

    return kernel


def _pick_block_b(b, d, itemsize):
    """Rows per tile.  Each of the three input blocks is (tb, D) and gets
    double-buffered, so keep a single block around <= 2 MiB (~12 MiB of
    pipelined input VMEM) - comfortable even on v7x's 64 MiB parts."""
    per_block_budget = 2 * 1024 * 1024
    max_tb = max(8, per_block_budget // (d * itemsize))
    if b <= max_tb:
        return b                                  # single tile == full array
    return max(8, (max_tb // 8) * 8)              # sublane-friendly


def custom_loss_forward(x, target, temperature=TEMPERATURE, block_b=None):
    """x: (B*4, D); target: (2, B) with 0/1 entries.

    Returns (mean contrastive loss scalar, bool[B] correctness indicator) —
    matching custom_loss.forward in the PyTorch reference.
    """
    n_rows, d = x.shape
    assert n_rows % 4 == 0, "x must reshape to (-1, 2, 2, D)"
    b = n_rows // 4
    # TODO(synk): feature dims that are not a multiple of 128 need either a
    # lane-padded copy or the old stride-4 sublane-gather path.
    assert d % 128 == 0, "feature dim must be a multiple of 128"

    itemsize = jnp.dtype(x.dtype).itemsize

    # Free row-major metadata reshape: row i holds [q | a1 | (unused) | a2].
    x2 = x.reshape(b, 4 * d)
    # Single merged target input; column layout matches the (tb, 1) scalars.
    tgt = jnp.transpose(target.astype(jnp.float32))          # (B, 2), tiny

    if block_b is None:
        block_b = _pick_block_b(b, d, itemsize)
    if block_b >= b:
        tb = b
    else:
        assert block_b % 8 == 0, "multi-tile block_b must be a multiple of 8"
        tb = block_b
    num_tiles = pl.cdiv(b, tb)      # ragged last tile handled by Pallas

    kernel = _make_kernel(temperature)

    cost = pl.CostEstimate(
        flops=10 * b * d,                       # 5 mul+add reductions per row
        transcendentals=6 * b,                  # 2 rsqrt + 2 exp + 2 log
        bytes_accessed=3 * b * d * itemsize + 2 * b * 4 + 2 * b * 4,
    )

    loss_rows, eq_i32 = pl.pallas_call(
        kernel,
        grid=(num_tiles,),
        in_specs=[
            pl.BlockSpec((tb, d), lambda i: (i, 0)),   # question rows  (4b+0)
            pl.BlockSpec((tb, d), lambda i: (i, 1)),   # answer-1 rows  (4b+1)
            pl.BlockSpec((tb, d), lambda i: (i, 3)),   # answer-2 rows  (4b+3)
            pl.BlockSpec((tb, 2), lambda i: (i, 0)),   # [t0 | t1] columns
        ],
        out_specs=(
            pl.BlockSpec((tb, 1), lambda i: (i, 0)),   # per-row loss
            pl.BlockSpec((tb, 1), lambda i: (i, 0)),   # per-row eq
        ),
        out_shape=(
            jax.ShapeDtypeStruct((b, 1), jnp.float32),
            jax.ShapeDtypeStruct((b, 1), jnp.int32),
        ),
        compiler_params=pltpu.CompilerParams(
            dimension_semantics=("parallel",),         # no cross-step deps
            vmem_limit_bytes=32 * 1024 * 1024,
        ),
        cost_estimate=cost,
    )(x2, x2, x2, tgt)

    loss_mean = jnp.mean(loss_rows)                    # tiny wrapper reduction
    return loss_mean, eq_i32[:, 0].astype(jnp.bool_)


if __name__ == "__main__":
    key = jax.random.PRNGKey(0)
    kx, kt, kx2, kt2 = jax.random.split(key, 4)

    # Pure-JAX reference mirroring the PyTorch module.
    def ref(x, target, temperature=TEMPERATURE):
        xr = x.reshape(-1, 2, 2, x.shape[-1])
        bsz = xr.shape[0]
        qf = xr[:, 0, 0, :]
        a1f = xr[:, 0, 1, :]
        a2f = xr[:, 1, 1, :]
        nrm = lambda v: v / jnp.maximum(
            jnp.linalg.norm(v, axis=1, keepdims=True), NORM_EPS)
        qf, a1f, a2f = nrm(qf), nrm(a1f), nrm(a2f)
        mask = jnp.eye(bsz)
        hp = jax.lax.Precision.HIGHEST
        qa = jnp.sum(mask * jnp.matmul(qf, a1f.T, precision=hp), -1) / temperature
        qc = jnp.sum(mask * jnp.matmul(qf, a2f.T, precision=hp), -1) / temperature
        neg = jnp.logical_not(target.astype(bool)).astype(jnp.float32)
        up = jnp.clip(neg[0] * jnp.exp(qa) + neg[1] * jnp.exp(qc),
                      CLAMP_EPS, jnp.inf)
        down = jnp.clip(target[0] * jnp.exp(qa) + target[1] * jnp.exp(qc),
                        CLAMP_EPS, jnp.inf)
        loss = jnp.log(up) - jnp.log(down)
        correct = (qa > qc).astype(jnp.float32)
        return loss.mean(), correct == target[0]

    # --- Test 1: small single-tile case ---------------------------------
    B, D = 8, 128
    x = jax.random.normal(kx, (B * 4, D), dtype=jnp.float32)
    t_row0 = jax.random.bernoulli(kt, 0.5, (B,)).astype(jnp.float32)
    target = jnp.stack([t_row0, 1.0 - t_row0], axis=0)

    loss, correct_eq = custom_loss_forward(x, target)
    jax.block_until_ready((loss, correct_eq))

    ref_loss, ref_eq = ref(x, target)
    assert jnp.allclose(loss, ref_loss, atol=1e-5, rtol=1e-5), (loss, ref_loss)
    assert bool(jnp.all(correct_eq == ref_eq))

    # --- Test 2: forces multi-tile grid + ragged last tile ---------------
    B2, D2 = 12, 128
    x2 = jax.random.normal(kx2, (B2 * 4, D2), dtype=jnp.float32)
    t2_row0 = jax.random.bernoulli(kt2, 0.5, (B2,)).astype(jnp.float32)
    target2 = jnp.stack([t2_row0, 1.0 - t2_row0], axis=0)

    loss2, eq2 = custom_loss_forward(x2, target2, block_b=8)
    jax.block_until_ready((loss2, eq2))

    ref_loss2, ref_eq2 = ref(x2, target2)
    assert jnp.allclose(loss2, ref_loss2, atol=1e-5, rtol=1e-5), (loss2, ref_loss2)
    assert bool(jnp.all(eq2 == ref_eq2))

    print("KERNEL_OK")
</pallas_src>

<mosaic_0001>
module attributes {stable_mosaic.version = 11 : i64} {
  func.func @kernel(%arg0: i32, %arg1: memref<8x128xf32, #tpu.memory_space<vmem>>, %arg2: memref<8x128xf32, #tpu.memory_space<vmem>>, %arg3: memref<8x128xf32, #tpu.memory_space<vmem>>, %arg4: memref<8x2xf32, #tpu.memory_space<vmem>>, %arg5: memref<8x1xf32, #tpu.memory_space<vmem>>, %arg6: memref<8x1xi32, #tpu.memory_space<vmem>>) attributes {dimension_semantics = [#tpu.dimension_semantics<parallel>], iteration_bounds = array<i64: 1>, scalar_prefetch = 0 : i64, scratch_operands = 0 : i64, tpu.core_type = #tpu.core_type<tc>, window_params = [{transform_indices = @transform_0, window_bounds = array<i64: 8, 128>}, {transform_indices = @transform_1, window_bounds = array<i64: 8, 128>}, {transform_indices = @transform_2, window_bounds = array<i64: 8, 128>}, {transform_indices = @transform_3, window_bounds = array<i64: 8, 2>}, {transform_indices = @transform_4, window_bounds = array<i64: 8, 1>}, {transform_indices = @transform_5, window_bounds = array<i64: 8, 1>}]} {
    %c0 = arith.constant 0 : index
    %c0_0 = arith.constant 0 : index
    %0 = vector.load %arg1[%c0, %c0_0] : memref<8x128xf32, #tpu.memory_space<vmem>>, vector<8x128xf32>
    %c0_1 = arith.constant 0 : index
    %c0_2 = arith.constant 0 : index
    %1 = vector.load %arg2[%c0_1, %c0_2] : memref<8x128xf32, #tpu.memory_space<vmem>>, vector<8x128xf32>
    %c0_3 = arith.constant 0 : index
    %c0_4 = arith.constant 0 : index
    %2 = vector.load %arg3[%c0_3, %c0_4] : memref<8x128xf32, #tpu.memory_space<vmem>>, vector<8x128xf32>
    %3 = arith.mulf %0, %0 : vector<8x128xf32>
    %cst = arith.constant dense<0.000000e+00> : vector<8xf32>
    %4 = vector.multi_reduction <add>, %3, %cst [1] : vector<8x128xf32> to vector<8xf32>
    %5 = vector.shape_cast %4 : vector<8xf32> to vector<8x1xf32>
    %cst_5 = arith.constant 1.000000e-24 : f32
    %6 = vector.broadcast %cst_5 : f32 to vector<8x1xf32>
    %7 = arith.maximumf %5, %6 : vector<8x1xf32>
    %8 = arith.mulf %1, %1 : vector<8x128xf32>
    %cst_6 = arith.constant dense<0.000000e+00> : vector<8xf32>
    %9 = vector.multi_reduction <add>, %8, %cst_6 [1] : vector<8x128xf32> to vector<8xf32>
    %10 = vector.shape_cast %9 : vector<8xf32> to vector<8x1xf32>
    %cst_7 = arith.constant 1.000000e-24 : f32
    %11 = vector.broadcast %cst_7 : f32 to vector<8x1xf32>
    %12 = arith.maximumf %10, %11 : vector<8x1xf32>
    %13 = arith.mulf %2, %2 : vector<8x128xf32>
    %cst_8 = arith.constant dense<0.000000e+00> : vector<8xf32>
    %14 = vector.multi_reduction <add>, %13, %cst_8 [1] : vector<8x128xf32> to vector<8xf32>
    %15 = vector.shape_cast %14 : vector<8xf32> to vector<8x1xf32>
    %cst_9 = arith.constant 1.000000e-24 : f32
    %16 = vector.broadcast %cst_9 : f32 to vector<8x1xf32>
    %17 = arith.maximumf %15, %16 : vector<8x1xf32>
    %18 = arith.mulf %0, %1 : vector<8x128xf32>
    %cst_10 = arith.constant dense<0.000000e+00> : vector<8xf32>
    %19 = vector.multi_reduction <add>, %18, %cst_10 [1] : vector<8x128xf32> to vector<8xf32>
    %20 = vector.shape_cast %19 : vector<8xf32> to vector<8x1xf32>
    %21 = arith.mulf %0, %2 : vector<8x128xf32>
    %cst_11 = arith.constant dense<0.000000e+00> : vector<8xf32>
    %22 = vector.multi_reduction <add>, %21, %cst_11 [1] : vector<8x128xf32> to vector<8xf32>
    %23 = vector.shape_cast %22 : vector<8xf32> to vector<8x1xf32>
    %24 = arith.mulf %7, %12 : vector<8x1xf32>
    %25 = math.rsqrt %24 : vector<8x1xf32>
    %26 = arith.mulf %20, %25 : vector<8x1xf32>
    %cst_12 = arith.constant 1.42857146 : f32
    %27 = vector.broadcast %cst_12 : f32 to vector<8x1xf32>
    %28 = arith.mulf %26, %27 : vector<8x1xf32>
    %29 = arith.mulf %7, %17 : vector<8x1xf32>
    %30 = math.rsqrt %29 : vector<8x1xf32>
    %31 = arith.mulf %23, %30 : vector<8x1xf32>
    %cst_13 = arith.constant 1.42857146 : f32
    %32 = vector.broadcast %cst_13 : f32 to vector<8x1xf32>
    %33 = arith.mulf %31, %32 : vector<8x1xf32>
    %c0_14 = arith.constant 0 : index
    %c0_15 = arith.constant 0 : index
    %34 = vector.load %arg4[%c0_14, %c0_15] : memref<8x2xf32, #tpu.memory_space<vmem>>, vector<8x1xf32>
    %c0_16 = arith.constant 0 : index
    %c1 = arith.constant 1 : index
    %35 = vector.load %arg4[%c0_16, %c1] : memref<8x2xf32, #tpu.memory_space<vmem>>, vector<8x1xf32>
    %36 = math.exp %28 : vector<8x1xf32>
    %37 = math.exp %33 : vector<8x1xf32>
    %cst_17 = arith.constant 1.000000e+00 : f32
    %38 = vector.broadcast %cst_17 : f32 to vector<8x1xf32>
    %39 = arith.subf %38, %34 : vector<8x1xf32>
    %40 = arith.mulf %39, %36 : vector<8x1xf32>
    %cst_18 = arith.constant 1.000000e+00 : f32
    %41 = vector.broadcast %cst_18 : f32 to vector<8x1xf32>
    %42 = arith.subf %41, %35 : vector<8x1xf32>
    %43 = arith.mulf %42, %37 : vector<8x1xf32>
    %44 = arith.addf %40, %43 : vector<8x1xf32>
    %cst_19 = arith.constant 9.99999993E-9 : f32
    %45 = vector.broadcast %cst_19 : f32 to vector<8x1xf32>
    %46 = arith.maximumf %44, %45 : vector<8x1xf32>
    %47 = arith.mulf %34, %36 : vector<8x1xf32>
    %48 = arith.mulf %35, %37 : vector<8x1xf32>
    %49 = arith.addf %47, %48 : vector<8x1xf32>
    %cst_20 = arith.constant 9.99999993E-9 : f32
    %50 = vector.broadcast %cst_20 : f32 to vector<8x1xf32>
    %51 = arith.maximumf %49, %50 : vector<8x1xf32>
    %52 = math.log %46 : vector<8x1xf32>
    %53 = math.log %51 : vector<8x1xf32>
    %54 = arith.subf %52, %53 : vector<8x1xf32>
    %c0_21 = arith.constant 0 : index
    %c0_22 = arith.constant 0 : index
    %55 = vector.load %arg5[%c0_21, %c0_22] : memref<8x1xf32, #tpu.memory_space<vmem>>, vector<8x1xf32>
    tpu.vector_store %arg5[%c0_21, %c0_22], %54 {strides = array<i32>} : memref<8x1xf32, #tpu.memory_space<vmem>>, vector<8x1xf32>,
    %56 = arith.cmpf ogt, %28, %33 : vector<8x1xf32>
    %57 = arith.extui %56 : vector<8x1xi1> to vector<8x1xi32>
    %58 = arith.sitofp %57 : vector<8x1xi32> to vector<8x1xf32>
    %59 = arith.cmpf oeq, %58, %34 : vector<8x1xf32>
    %60 = arith.extui %59 : vector<8x1xi1> to vector<8x1xi32>
    %c0_23 = arith.constant 0 : index
    %c0_24 = arith.constant 0 : index
    %61 = vector.load %arg6[%c0_23, %c0_24] : memref<8x1xi32, #tpu.memory_space<vmem>>, vector<8x1xi32>
    tpu.vector_store %arg6[%c0_23, %c0_24], %60 {strides = array<i32>} : memref<8x1xi32, #tpu.memory_space<vmem>>, vector<8x1xi32>,
    return
  }
  func.func @transform_0(%arg0: i32) -> (i32, i32) {
    %c0_i32 = arith.constant 0 : i32
    %c0_i32_0 = arith.constant 0 : i32
    return %arg0, %c0_i32 : i32, i32
  }
  func.func @transform_1(%arg0: i32) -> (i32, i32) {
    %c1_i32 = arith.constant 1 : i32
    %c0_i32 = arith.constant 0 : i32
    return %arg0, %c1_i32 : i32, i32
  }
  func.func @transform_2(%arg0: i32) -> (i32, i32) {
    %c3_i32 = arith.constant 3 : i32
    %c0_i32 = arith.constant 0 : i32
    return %arg0, %c3_i32 : i32, i32
  }
  func.func @transform_3(%arg0: i32) -> (i32, i32) {
    %c0_i32 = arith.constant 0 : i32
    %c0_i32_0 = arith.constant 0 : i32
    return %arg0, %c0_i32 : i32, i32
  }
  func.func @transform_4(%arg0: i32) -> (i32, i32) {
    %c0_i32 = arith.constant 0 : i32
    %c0_i32_0 = arith.constant 0 : i32
    return %arg0, %c0_i32 : i32, i32
  }
  func.func @transform_5(%arg0: i32) -> (i32, i32) {
    %c0_i32 = arith.constant 0 : i32
    %c0_i32_0 = arith.constant 0 : i32
    return %arg0, %c0_i32 : i32, i32
  }
}

</mosaic_0001>

<llo_original>
// kernel: tpu_custom_call.1
$region0: #{tpu_custom_call.1}
  #allocation0 [shape = 'u32[]', space=smem, size = 0x4, offset = 0x4, fixed_abs, tag = 'smem constant byte address 0x4 - core index']
  #allocation1 [shape = 'u32[144,128]{1,0:T(1,128)}', space=vmem, size = 0x12000, scoped, tag = 'internal scratch']
  %s0 = inlined_call_operand.hbm [shape: f32[8,512], index: 0, kind: input, shape index: {}]
  %s1 = inlined_call_operand.hbm [shape: f32[8,512], index: 1, kind: input, shape index: {}]
  %s2 = inlined_call_operand.hbm [shape: f32[8,512], index: 2, kind: input, shape index: {}]
  %s3 = inlined_call_operand.vmem [shape: f32[8,2], index: 3, kind: input, shape index: {}]
  %s4 = inlined_call_operand.vmem [shape: f32[8,1], index: 4, kind: output, shape index: {0}]
  %s5 = inlined_call_operand.vmem [shape: s32[8,1], index: 5, kind: output, shape index: {1}]
  %6 = xla_tuple %s4, %s5
  %s7 = sld [smem:[#allocation0]]
  $region46: #{tpu_custom_call.1} parent=0
    _
  %s9 = ssub.s32 1, %s7
  %s10 = scalar_select 0, %s9, %s7
  $region1: #{tpu_custom_call.1} parent=0
    #allocation2 [shape = 'u8[4096]{0}', space=vmem, size = 0x1000, scoped, tag = 'input window, operand 0, single buffered']
    #allocation3 [shape = 's32[1]{0}', space=sflag, size = 0x4, scoped, tag = 'scoped memory for tpu_custom_call.1']
    #allocation4 [shape = 'u8[4096]{0}', space=vmem, size = 0x1000, scoped, tag = 'input window, operand 1, single buffered']
    #allocation5 [shape = 's32[1]{0}', space=sflag, size = 0x4, scoped, tag = 'scoped memory for tpu_custom_call.1']
    #allocation6 [shape = 'u8[4096]{0}', space=vmem, size = 0x1000, scoped, tag = 'input window, operand 2, single buffered']
    %11 = vsyncpa [#allocation3], 0
    %12 = vsyncpa [#allocation5], 0
    // Predicated region
    $region2: #{tpu_custom_call.1} parent=1 // pred_check
      _
    $region3: #{tpu_custom_call.1} parent=1 // pred_check_branch
      %14 = sbr.rel (0) target = $region5
    $region4: #{tpu_custom_call.1} parent=1 // pred_region
      %s16 = ssub.s32 128, 128
      %17 = vsyncadd [#allocation3], %s16
      %s19 = sshll.u32 [#allocation2], 4
      %s20 = int_to_ptr.vmem [resolvable:$true] %s19
      %22 = dma.hbm_to_vmem [thread:$0]  %s0, 128, %s20, [#allocation3]
    $region5: #{tpu_custom_call.1} parent=1 // pred_fallthru
      _
    // Predicated region
    $region6: #{tpu_custom_call.1} parent=1 // pred_check
      _
    $region7: #{tpu_custom_call.1} parent=1 // pred_check_branch
      %24 = sbr.rel (0) target = $region9
    $region8: #{tpu_custom_call.1} parent=1 // pred_region
      %s26 = ssub.s32 128, 128
      %27 = vsyncadd [#allocation5], %s26
      %s28 = scalar_lea.hbm %s1, 128
      %s30 = sshll.u32 [#allocation4], 4
      %s31 = int_to_ptr.vmem [resolvable:$true] %s30
      %33 = dma.hbm_to_vmem [thread:$0]  %s28, 128, %s31, [#allocation5]
    $region9: #{tpu_custom_call.1} parent=1 // pred_fallthru
      _
    // Predicated region
    $region10: #{tpu_custom_call.1} parent=1 // pred_check
      _
    $region11: #{tpu_custom_call.1} parent=1 // pred_check_branch
      %35 = sbr.rel (0) target = $region13
    $region12: #{tpu_custom_call.1} parent=1 // pred_region
      %s37 = ssub.s32 128, 128
      %38 = vsyncadd [#allocation5], %s37
      %s39 = scalar_lea.hbm %s2, 384
      %s41 = sshll.u32 [#allocation6], 4
      %s42 = int_to_ptr.vmem [resolvable:$true] %s41
      %44 = dma.hbm_to_vmem [thread:$0]  %s39, 128, %s42, [#allocation5]
    $region13: #{tpu_custom_call.1} parent=1 // pred_fallthru
      _
    // Predicated region
    $region14: #{tpu_custom_call.1} parent=1 // pred_check
      _
    $region15: #{tpu_custom_call.1} parent=1 // pred_check_branch
      %46 = sbr.rel (0) target = $region17
    $region16: #{tpu_custom_call.1} parent=1 // pred_region
      _
    $region17: #{tpu_custom_call.1} parent=1 // pred_fallthru
      _
    // Predicated region
    $region18: #{tpu_custom_call.1} parent=1 // pred_check
      _
    $region19: #{tpu_custom_call.1} parent=1 // pred_check_branch
      %48 = sbr.rel (0) target = $region21
    $region20: #{tpu_custom_call.1} parent=1 // pred_region
      %49 = dma.done [#allocation3], 128
    $region21: #{tpu_custom_call.1} parent=1 // pred_fallthru
      _
    // Predicated region
    $region22: #{tpu_custom_call.1} parent=1 // pred_check
      _
    $region23: #{tpu_custom_call.1} parent=1 // pred_check_branch
      %51 = sbr.rel (0) target = $region25
    $region24: #{tpu_custom_call.1} parent=1 // pred_region
      %52 = dma.done [#allocation5], 128
    $region25: #{tpu_custom_call.1} parent=1 // pred_fallthru
      _
    // Predicated region
    $region26: #{tpu_custom_call.1} parent=1 // pred_check
      _
    $region27: #{tpu_custom_call.1} parent=1 // pred_check_branch
      %54 = sbr.rel (0) target = $region29
    $region28: #{tpu_custom_call.1} parent=1 // pred_region
      %55 = dma.done [#allocation5], 128
    $region29: #{tpu_custom_call.1} parent=1 // pred_fallthru
      _
    %v56 = vld [vmem:[#allocation2] sm:$0xff]
    %v57 = vld [vmem:[#allocation4] sm:$0xff]
    %v58 = vld [vmem:[#allocation6] sm:$0xff]
    %v59 = vmul.f32 %v56, %v56
    %60 = vadd.xlane.f32.xlu0 %v59
    %v61 = vpop.xlane.xlu0 %60
    %v62 = vmax.f32 %v61, 1e-24
    %v63 = vmul.f32 %v57, %v57
    %64 = vadd.xlane.f32.xlu0 %v63
    %v65 = vpop.xlane.xlu0 %64
    %v66 = vmax.f32 %v65, 1e-24
    %v67 = vmul.f32 %v58, %v58
    %68 = vadd.xlane.f32.xlu0 %v67
    %v69 = vpop.xlane.xlu0 %68
    %v70 = vmax.f32 %v69, 1e-24
    %v71 = vmul.f32 %v56, %v57
    %72 = vadd.xlane.f32.xlu0 %v71
    %v73 = vpop.xlane.xlu0 %72
    %v74 = vmul.f32 %v56, %v58
    %75 = vadd.xlane.f32.xlu0 %v74
    %v76 = vpop.xlane.xlu0 %75
    %v77 = vmul.f32 %v62, %v66
    %v78 = vrsqrt.pop %v77
    %v79 = vmul.f32 %v73, %v78
    %v80 = vmul.f32 %v79, 1.4285715
    %v81 = vmul.f32 %v62, %v70
    %v82 = vrsqrt.pop %v81
    %v83 = vmul.f32 %v76, %v82
    %v84 = vmul.f32 %v83, 1.4285715
    %v85 = vld [vmem:[%s3] sm:$0xff]
    %v86 = vmul.f32 %v80, 1.442695
    %v87 = vpow.pop %v86
    %v88 = vmul.f32 %v84, 1.442695
    %v89 = vpow.pop %v88
    %v90 = vsub.f32 1.0, %v85
    %v91 = vmul.f32 %v90, %v87
    %v92 = vmul.f32 %v90, %v89
    %94 = vrot.lane.b32.xlu0 %v92, 127
    %v95 = vpop.permute.xlu0 %94
    %v97 = vadd.f32 %v91, %v95
    %v98 = vmax.f32 %v97, 1e-08
    %v99 = vmul.f32 %v85, %v87
    %v100 = vmul.f32 %v85, %v89
    %102 = vrot.lane.b32.xlu0 %v100, 127
    %v103 = vpop.permute.xlu0 %102
    %v105 = vadd.f32 %v99, %v103
    %v106 = vmax.f32 %v105, 1e-08
    %v107 = vlog2.pop %v98
    %v108 = vmul.f32 %v107, 0.6931472
    %v109 = vlog2.pop %v106
    %v110 = vmul.f32 %v109, 0.6931472
    %v111 = vsub.f32 %v108, %v110
    %vm112 = vcmask 7168
    %113 = vst.msk [vmem:[%s4] sm:$0xff] %vm112, %v111
    %vm114 = vcmp.gt.f32.partialorder %v80, %v84
    %v115 = vsel %vm114, 1, 0
    %v116 = vcvt.s32.f32 %v115
    %vm117 = vcmp.eq.f32.partialorder %v116, %v85
    %v118 = vsel %vm117, 1, 0
    %119 = vst.msk [vmem:[%s5] sm:$0xff] %vm112, %v118
    // Predicated region
    $region30: #{tpu_custom_call.1} parent=1 // pred_check
      _
    $region31: #{tpu_custom_call.1} parent=1 // pred_check_branch
      %121 = sbr.rel (0) target = $region33
    $region32: #{tpu_custom_call.1} parent=1 // pred_region
      _
    $region33: #{tpu_custom_call.1} parent=1 // pred_fallthru
      _
    // Predicated region
    $region34: #{tpu_custom_call.1} parent=1 // pred_check
      _
    $region35: #{tpu_custom_call.1} parent=1 // pred_check_branch
      %123 = sbr.rel (0) target = $region37
    $region36: #{tpu_custom_call.1} parent=1 // pred_region
      _
    $region37: #{tpu_custom_call.1} parent=1 // pred_fallthru
      _
    // Predicated region
    $region38: #{tpu_custom_call.1} parent=1 // pred_check
      _
    $region39: #{tpu_custom_call.1} parent=1 // pred_check_branch
      %125 = sbr.rel (0) target = $region41
    $region40: #{tpu_custom_call.1} parent=1 // pred_region
      _
    $region41: #{tpu_custom_call.1} parent=1 // pred_fallthru
      _
    // Predicated region
    $region42: #{tpu_custom_call.1} parent=1 // pred_check
      _
    $region43: #{tpu_custom_call.1} parent=1 // pred_check_branch
      %127 = sbr.rel (0) target = $region45
    $region44: #{tpu_custom_call.1} parent=1 // pred_region
      _
    $region45: #{tpu_custom_call.1} parent=1 // pred_fallthru
      _
    %128 = vsyncpa [#allocation3], 1
    %129 = vsyncpa [#allocation5], 1

</llo_original>
